<compile_context>
chip_gen: v5e
topology: v5e:2x2
jax: 0.10.0
libtpu: 0.0.40
codegen_flags: <defaults>
</compile_context>

<pallas_src>
import jax
import jax.numpy as jnp
from jax.experimental import pallas as pl
from jax.experimental.pallas import tpu as pltpu


def _round_up(x: int, m: int) -> int:
    return ((x + m - 1) // m) * m


# ----------------------------- Pallas kernels --------------------------------
def _proj_kernel(x_ref, w_ref, o_ref):
    # Z = X @ W12 (GCNConv.lin and final Linear weights folded), f32 accumulate.
    o_ref[...] = jnp.dot(
        x_ref[...], w_ref[...], preferred_element_type=jnp.float32
    ).astype(o_ref.dtype)


def _agg_kernel(a_ref, z_ref, b_ref, o_ref, acc_ref):
    # out[i] = sum_k A[i, k] @ Z[k] + b12 ; K-tiled accumulation in f32 scratch.
    k = pl.program_id(1)

    @pl.when(k == 0)
    def _init():
        acc_ref[...] = jnp.zeros_like(acc_ref)

    acc_ref[...] += jnp.dot(
        a_ref[...], z_ref[...], preferred_element_type=jnp.float32
    )

    @pl.when(k == pl.num_programs(1) - 1)
    def _finalize():
        # Bias added exactly once, on the last K tile.
        o_ref[...] = (acc_ref[...] + b_ref[...]).astype(o_ref.dtype)


# --------------------------------- wrapper ------------------------------------
def gnn_v1_forward(a_hat, x, w1, b1, w2, b2, *, tile=512):
    """Eval-mode GNN_v1 forward (use_weights=True): Linear(Dropout(GCNConv(x)))."""
    n, hidden = x.shape
    out_channels = w2.shape[1]

    # ---- eval-mode fold of the two linear layers (tiny JAX glue, exact math) --
    w12 = (w1 @ w2).astype(jnp.float32)          # [hidden, out_channels]
    b12 = (b1 @ w2 + b2).astype(jnp.float32)     # [1, out_channels]

    # ---- pad to MXU / lane-friendly sizes -------------------------------------
    f_pad = _round_up(out_channels, 128)         # lane-dense output width
    t = min(tile, _round_up(n, 128))             # A tile is (t, t)
    n_pad = _round_up(n, t)
    h_pad = _round_up(hidden, 8)                 # sublane-aligned contraction dim

    a_p = jnp.zeros((n_pad, n_pad), jnp.bfloat16).at[:n, :n].set(
        a_hat.astype(jnp.bfloat16))
    x_p = jnp.zeros((n_pad, h_pad), jnp.bfloat16).at[:n, :hidden].set(
        x.astype(jnp.bfloat16))
    w_p = jnp.zeros((h_pad, f_pad), jnp.bfloat16).at[:hidden, :out_channels].set(
        w12.astype(jnp.bfloat16))
    b_p = jnp.zeros((1, f_pad), jnp.float32).at[:, :out_channels].set(b12)

    # ---- kernel 1: lane-dense projection Z = X @ W12 (hoisted out of A loop) --
    z = pl.pallas_call(
        _proj_kernel,
        out_shape=jax.ShapeDtypeStruct((n_pad, f_pad), jnp.bfloat16),
        grid=(n_pad // t,),
        in_specs=[
            pl.BlockSpec((t, h_pad), lambda i: (i, 0)),
            pl.BlockSpec((h_pad, f_pad), lambda i: (0, 0)),
        ],
        out_specs=pl.BlockSpec((t, f_pad), lambda i: (i, 0)),
        compiler_params=pltpu.CompilerParams(
            dimension_semantics=("parallel",)),
    )(x_p, w_p)

    # ---- kernel 2: tiled aggregation out = A_hat @ Z + b12 --------------------
    out_p = pl.pallas_call(
        _agg_kernel,
        out_shape=jax.ShapeDtypeStruct((n_pad, f_pad), jnp.float32),
        grid=(n_pad // t, n_pad // t),
        in_specs=[
            pl.BlockSpec((t, t), lambda i, k: (i, k)),        # A_hat tile
            pl.BlockSpec((t, f_pad), lambda i, k: (k, 0)),    # Z K-tile
            pl.BlockSpec((1, f_pad), lambda i, k: (0, 0)),    # folded bias
        ],
        out_specs=pl.BlockSpec((t, f_pad), lambda i, k: (i, 0)),
        scratch_shapes=[pltpu.VMEM((t, f_pad), jnp.float32)],
        compiler_params=pltpu.CompilerParams(
            dimension_semantics=("parallel", "arbitrary")),
    )(a_p, z, b_p)

    return out_p[:n, :out_channels]


# ------------------------- glue: GCN normalization ----------------------------
def build_gcn_adjacency(edge_index, edge_weight, num_nodes):
    """Dense GCN-normalized adjacency A_hat with self-loops (PyG gcn_norm).

    A_hat[i, j] = deg_inv_sqrt[i] * w_ij * deg_inv_sqrt[j], aggregated at target i
    (edge_index[0]=source, edge_index[1]=target, flow source_to_target).
    """
    loops = jnp.stack([jnp.arange(num_nodes), jnp.arange(num_nodes)], axis=0)
    ei = jnp.concatenate([edge_index, loops], axis=1)
    ew = jnp.concatenate(
        [edge_weight, jnp.ones((num_nodes,), edge_weight.dtype)], axis=0)
    row, col = ei[0], ei[1]
    deg = jnp.zeros((num_nodes,), jnp.float32).at[col].add(ew)
    deg_inv_sqrt = jnp.where(deg > 0, jax.lax.rsqrt(deg), 0.0)
    norm = deg_inv_sqrt[row] * ew * deg_inv_sqrt[col]
    a_hat = jnp.zeros((num_nodes, num_nodes), jnp.float32).at[col, row].add(norm)
    return a_hat


# --------------------------------- demo ----------------------------------------
if __name__ == "__main__":
    key = jax.random.PRNGKey(0)
    k_x, k_ei, k_ew, k_w1, k_w2, k_b2 = jax.random.split(key, 6)

    num_nodes = 16
    num_edges = 40
    hidden_channels = 32
    gcn_out = 128
    out_channels = 8

    # Inputs
    x = jax.random.normal(k_x, (num_nodes, hidden_channels), jnp.float32)
    edge_index = jax.random.randint(k_ei, (2, num_edges), 0, num_nodes, jnp.int32)
    edge_weight = jax.random.uniform(k_ew, (num_edges,), jnp.float32, 0.1, 1.0)

    # Parameters (deterministic, glorot-like scale)
    w1 = jax.random.normal(k_w1, (hidden_channels, gcn_out), jnp.float32) * (
        1.0 / jnp.sqrt(hidden_channels))
    b1 = jnp.zeros((1, gcn_out), jnp.float32)           # GCNConv bias init = zeros
    w2 = jax.random.normal(k_w2, (gcn_out, out_channels), jnp.float32) * (
        1.0 / jnp.sqrt(gcn_out))
    b2 = jax.random.normal(k_b2, (1, out_channels), jnp.float32) * 0.01

    a_hat = build_gcn_adjacency(edge_index, edge_weight, num_nodes)

    out = jax.jit(gnn_v1_forward)(a_hat, x, w1, b1, w2, b2)
    out = jax.block_until_ready(out)

    # Pure-JAX f32 reference of the original module math (eval-mode dropout).
    ref = (a_hat @ (x @ w1) + b1) @ w2 + b2
    assert out.shape == (num_nodes, out_channels)
    # bf16 MXU inputs with f32 accumulation -> loose tolerance vs f32 reference.
    assert jnp.allclose(out, ref, atol=5e-2, rtol=5e-2)

    print("KERNEL_OK")
</pallas_src>

<mosaic_0001>
module attributes {stable_mosaic.version = 11 : i64} {
  func.func @_proj_kernel(%arg0: i32, %arg1: memref<128x32xbf16, #tpu.memory_space<vmem>>, %arg2: memref<32x128xbf16, #tpu.memory_space<vmem>>, %arg3: memref<128x128xbf16, #tpu.memory_space<vmem>>) attributes {dimension_semantics = [#tpu.dimension_semantics<parallel>], iteration_bounds = array<i64: 1>, scalar_prefetch = 0 : i64, scratch_operands = 0 : i64, tpu.core_type = #tpu.core_type<tc>, window_params = [{transform_indices = @transform_0, window_bounds = array<i64: 128, 32>}, {pipeline_mode = #tpu.pipeline_mode<synchronous>, transform_indices = @transform_1, window_bounds = array<i64: 32, 128>}, {transform_indices = @transform_2, window_bounds = array<i64: 128, 128>}]} {
    %c0 = arith.constant 0 : index
    %c0_0 = arith.constant 0 : index
    %0 = vector.load %arg1[%c0, %c0_0] : memref<128x32xbf16, #tpu.memory_space<vmem>>, vector<128x32xbf16>
    %c0_1 = arith.constant 0 : index
    %c0_2 = arith.constant 0 : index
    %1 = vector.load %arg2[%c0_1, %c0_2] : memref<32x128xbf16, #tpu.memory_space<vmem>>, vector<32x128xbf16>
    %cst = arith.constant dense<0.000000e+00> : vector<128x128xf32>
    %2 = tpu.matmul %0, %1, %cst {dimension_numbers = #tpu.dot_dimension_numbers<[1], [0], [0], [1], [0, 0, 1, 1], [], []>} : vector<128x32xbf16>, vector<32x128xbf16>, vector<128x128xf32> -> vector<128x128xf32>
    %3 = arith.truncf %2 : vector<128x128xf32> to vector<128x128xbf16>
    %c0_3 = arith.constant 0 : index
    %c0_4 = arith.constant 0 : index
    %4 = vector.load %arg3[%c0_3, %c0_4] : memref<128x128xbf16, #tpu.memory_space<vmem>>, vector<128x128xbf16>
    tpu.vector_store %arg3[%c0_3, %c0_4], %3 {strides = array<i32>} : memref<128x128xbf16, #tpu.memory_space<vmem>>, vector<128x128xbf16>,
    return
  }
  func.func @transform_0(%arg0: i32) -> (i32, i32) {
    %c0_i32 = arith.constant 0 : i32
    %c0_i32_0 = arith.constant 0 : i32
    return %arg0, %c0_i32 : i32, i32
  }
  func.func @transform_1(%arg0: i32) -> (i32, i32) {
    %c0_i32 = arith.constant 0 : i32
    %c0_i32_0 = arith.constant 0 : i32
    %c0_i32_1 = arith.constant 0 : i32
    return %c0_i32, %c0_i32_0 : i32, i32
  }
  func.func @transform_2(%arg0: i32) -> (i32, i32) {
    %c0_i32 = arith.constant 0 : i32
    %c0_i32_0 = arith.constant 0 : i32
    return %arg0, %c0_i32 : i32, i32
  }
}

module attributes {stable_mosaic.version = 11 : i64} {
  func.func @_agg_kernel(%arg0: i32, %arg1: i32, %arg2: memref<128x128xbf16, #tpu.memory_space<vmem>>, %arg3: memref<128x128xbf16, #tpu.memory_space<vmem>>, %arg4: memref<1x128xf32, #tpu.memory_space<vmem>>, %arg5: memref<128x128xf32, #tpu.memory_space<vmem>>, %arg6: memref<128x128xf32, #tpu.memory_space<vmem>>) attributes {dimension_semantics = [#tpu.dimension_semantics<parallel>, #tpu.dimension_semantics<arbitrary>], iteration_bounds = array<i64: 1, 1>, scalar_prefetch = 0 : i64, scratch_operands = 1 : i64, tpu.core_type = #tpu.core_type<tc>, window_params = [{transform_indices = @transform_0, window_bounds = array<i64: 128, 128>}, {transform_indices = @transform_1, window_bounds = array<i64: 128, 128>}, {pipeline_mode = #tpu.pipeline_mode<synchronous>, transform_indices = @transform_2, window_bounds = array<i64: 1, 128>}, {transform_indices = @transform_3, window_bounds = array<i64: 128, 128>}]} {
    %c0_i32 = arith.constant 0 : i32
    %0 = arith.cmpi eq, %arg1, %c0_i32 : i32
    %1 = arith.extui %0 : i1 to i32
    %c0_i32_0 = arith.constant 0 : i32
    %2 = arith.cmpi ne, %1, %c0_i32_0 : i32
    scf.if %2 {
      %cst_10 = arith.constant 0.000000e+00 : f32
      %12 = vector.broadcast %cst_10 : f32 to vector<128x128xf32>
      %c0_11 = arith.constant 0 : index
      %c0_12 = arith.constant 0 : index
      %13 = vector.load %arg6[%c0_11, %c0_12] : memref<128x128xf32, #tpu.memory_space<vmem>>, vector<128x128xf32>
      tpu.vector_store %arg6[%c0_11, %c0_12], %12 {strides = array<i32>} : memref<128x128xf32, #tpu.memory_space<vmem>>, vector<128x128xf32>,
    } else {
    }
    %c0 = arith.constant 0 : index
    %c0_1 = arith.constant 0 : index
    %3 = vector.load %arg6[%c0, %c0_1] : memref<128x128xf32, #tpu.memory_space<vmem>>, vector<128x128xf32>
    %c0_2 = arith.constant 0 : index
    %c0_3 = arith.constant 0 : index
    %4 = vector.load %arg2[%c0_2, %c0_3] : memref<128x128xbf16, #tpu.memory_space<vmem>>, vector<128x128xbf16>
    %c0_4 = arith.constant 0 : index
    %c0_5 = arith.constant 0 : index
    %5 = vector.load %arg3[%c0_4, %c0_5] : memref<128x128xbf16, #tpu.memory_space<vmem>>, vector<128x128xbf16>
    %cst = arith.constant dense<0.000000e+00> : vector<128x128xf32>
    %6 = tpu.matmul %4, %5, %cst {dimension_numbers = #tpu.dot_dimension_numbers<[1], [0], [0], [1], [0, 0, 1, 1], [], []>} : vector<128x128xbf16>, vector<128x128xbf16>, vector<128x128xf32> -> vector<128x128xf32>
    %7 = arith.addf %3, %6 : vector<128x128xf32>
    %c0_6 = arith.constant 0 : index
    %c0_7 = arith.constant 0 : index
    %8 = vector.load %arg6[%c0_6, %c0_7] : memref<128x128xf32, #tpu.memory_space<vmem>>, vector<128x128xf32>
    tpu.vector_store %arg6[%c0_6, %c0_7], %7 {strides = array<i32>} : memref<128x128xf32, #tpu.memory_space<vmem>>, vector<128x128xf32>,
    %c0_i32_8 = arith.constant 0 : i32
    %9 = arith.cmpi eq, %arg1, %c0_i32_8 : i32
    %10 = arith.extui %9 : i1 to i32
    %c0_i32_9 = arith.constant 0 : i32
    %11 = arith.cmpi ne, %10, %c0_i32_9 : i32
    scf.if %11 {
      %c0_10 = arith.constant 0 : index
      %c0_11 = arith.constant 0 : index
      %12 = vector.load %arg6[%c0_10, %c0_11] : memref<128x128xf32, #tpu.memory_space<vmem>>, vector<128x128xf32>
      %c0_12 = arith.constant 0 : index
      %c0_13 = arith.constant 0 : index
      %13 = vector.load %arg4[%c0_12, %c0_13] : memref<1x128xf32, #tpu.memory_space<vmem>>, vector<1x128xf32>
      %14 = vector.broadcast %13 : vector<1x128xf32> to vector<128x128xf32>
      %15 = arith.addf %12, %14 : vector<128x128xf32>
      %c0_14 = arith.constant 0 : index
      %c0_15 = arith.constant 0 : index
      %16 = vector.load %arg5[%c0_14, %c0_15] : memref<128x128xf32, #tpu.memory_space<vmem>>, vector<128x128xf32>
      tpu.vector_store %arg5[%c0_14, %c0_15], %15 {strides = array<i32>} : memref<128x128xf32, #tpu.memory_space<vmem>>, vector<128x128xf32>,
    } else {
    }
    return
  }
  func.func @transform_0(%arg0: i32, %arg1: i32) -> (i32, i32) {
    %c0_i32 = arith.constant 0 : i32
    return %arg0, %arg1 : i32, i32
  }
  func.func @transform_1(%arg0: i32, %arg1: i32) -> (i32, i32) {
    %c0_i32 = arith.constant 0 : i32
    %c0_i32_0 = arith.constant 0 : i32
    return %arg1, %c0_i32 : i32, i32
  }
  func.func @transform_2(%arg0: i32, %arg1: i32) -> (i32, i32) {
    %c0_i32 = arith.constant 0 : i32
    %c0_i32_0 = arith.constant 0 : i32
    %c0_i32_1 = arith.constant 0 : i32
    return %c0_i32, %c0_i32_0 : i32, i32
  }
  func.func @transform_3(%arg0: i32, %arg1: i32) -> (i32, i32) {
    %c0_i32 = arith.constant 0 : i32
    %c0_i32_0 = arith.constant 0 : i32
    return %arg0, %c0_i32 : i32, i32
  }
}

</mosaic_0001>

<llo_original>
// kernel: gnn_v1_forward.2
$region0: #{gnn_v1_forward.2}
  #allocation0 [shape = 'u32[]', space=smem, size = 0x4, offset = 0x4, fixed_abs, tag = 'smem constant byte address 0x4 - core index']
  #allocation1 [shape = 'u32[72,128]{1,0:T(1,128)}', space=vmem, size = 0x9000, scoped, tag = 'internal scratch']
  %s0 = inlined_call_operand.vmem [shape: bf16[128,32], index: 0, kind: input, shape index: {}]
  %s1 = inlined_call_operand.vmem [shape: bf16[32,128], index: 1, kind: input, shape index: {}]
  %s2 = inlined_call_operand.vmem [shape: bf16[128,128], index: 2, kind: output, shape index: {}]
  %s3 = sld [smem:[#allocation0]]
  $region18: #{gnn_v1_forward.2} parent=0
    _
  %s5 = ssub.s32 1, %s3
  %s6 = scalar_select 0, %s5, %s3
  // Predicated region
  $region2: #{gnn_v1_forward.2} parent=0 // pred_check
    _
  $region3: #{gnn_v1_forward.2} parent=0 // pred_check_branch
    %8 = sbr.rel (0) target = $region5
  $region4: #{gnn_v1_forward.2} parent=0 // pred_region
    _
  $region5: #{gnn_v1_forward.2} parent=0 // pred_fallthru
    _
  // Predicated region
  $region6: #{gnn_v1_forward.2} parent=0 // pred_check
    _
  $region7: #{gnn_v1_forward.2} parent=0 // pred_check_branch
    %10 = sbr.rel (0) target = $region9
  $region8: #{gnn_v1_forward.2} parent=0 // pred_region
    _
  $region9: #{gnn_v1_forward.2} parent=0 // pred_fallthru
    _
  %v12 = vld [vmem:[%s0] sm:$0xf]
  %v13 = vld [vmem:[%s0 + $0x4] sm:$0xf]
  %v14 = vld [vmem:[%s0 + $0x8] sm:$0xf]
  %v15 = vld [vmem:[%s0 + $0xc] sm:$0xf]
  %v16 = vld [vmem:[%s0 + $0x10] sm:$0xf]
  %v17 = vld [vmem:[%s0 + $0x14] sm:$0xf]
  %v18 = vld [vmem:[%s0 + $0x18] sm:$0xf]
  %v19 = vld [vmem:[%s0 + $0x1c] sm:$0xf]
  %v20 = vld [vmem:[%s0 + $0x20] sm:$0xf]
  %v21 = vld [vmem:[%s0 + $0x24] sm:$0xf]
  %v22 = vld [vmem:[%s0 + $0x28] sm:$0xf]
  %v23 = vld [vmem:[%s0 + $0x2c] sm:$0xf]
  %v24 = vld [vmem:[%s0 + $0x30] sm:$0xf]
  %v25 = vld [vmem:[%s0 + $0x34] sm:$0xf]
  %v26 = vld [vmem:[%s0 + $0x38] sm:$0xf]
  %v27 = vld [vmem:[%s0 + $0x3c] sm:$0xf]
  %v28 = vld [vmem:[%s1] sm:$0xf]
  %v29 = vld [vmem:[%s1 + $0x4] sm:$0xf]
  %v30 = vld [vmem:[%s1 + $0x8] sm:$0xf]
  %v31 = vld [vmem:[%s1 + $0xc] sm:$0xf]
  %v48 = vunpack.c.l.b16 %v12
  %v49 = vunpack.c.l.b16 %v13
  %v50 = vunpack.c.l.b16 %v14
  %v51 = vunpack.c.l.b16 %v15
  %v52 = vunpack.c.l.b16 %v16
  %v53 = vunpack.c.l.b16 %v17
  %v54 = vunpack.c.l.b16 %v18
  %v55 = vunpack.c.l.b16 %v19
  %v56 = vunpack.c.l.b16 %v20
  %v57 = vunpack.c.l.b16 %v21
  %v58 = vunpack.c.l.b16 %v22
  %v59 = vunpack.c.l.b16 %v23
  %v60 = vunpack.c.l.b16 %v24
  %v61 = vunpack.c.l.b16 %v25
  %v62 = vunpack.c.l.b16 %v26
  %v63 = vunpack.c.l.b16 %v27
  %v64 = vpack.c.b16 %v49, %v48
  %v65 = vpack.c.b16 %v51, %v50
  %v66 = vpack.c.b16 %v53, %v52
  %v67 = vpack.c.b16 %v55, %v54
  %v68 = vpack.c.b16 %v57, %v56
  %v69 = vpack.c.b16 %v59, %v58
  %v70 = vpack.c.b16 %v61, %v60
  %v71 = vpack.c.b16 %v63, %v62
  %v76 = vunpack.c.l.b16 %v28
  %v77 = vunpack.c.l.b16 %v29
  %v78 = vunpack.c.l.b16 %v30
  %v79 = vunpack.c.l.b16 %v31
  %v80 = vpack.c.b16 %v77, %v76
  %v81 = vpack.c.b16 %v79, %v78
  %vm84 = vcmask 261120
  %v86 = vsel %vm84, %v64, 0
  %v89 = vsel %vm84, %v65, 0
  %v92 = vsel %vm84, %v66, 0
  %v95 = vsel %vm84, %v67, 0
  %v98 = vsel %vm84, %v68, 0
  %v101 = vsel %vm84, %v69, 0
  %v104 = vsel %vm84, %v70, 0
  %v107 = vsel %vm84, %v71, 0
  %109 = vmatpush.bf16.msra.mxu0 0
  %110 = vmatpush.bf16.msra.mxu0 0
  %111 = vmatpush.bf16.msra.mxu0 0
  %112 = vmatpush.bf16.msra.mxu0 0
  %113 = vmatpush.bf16.msra.mxu0 0
  %114 = vmatpush.bf16.msra.mxu0 0
  %115 = vmatpush.bf16.msra.mxu0 %v81
  %116 = vmatpush.bf16.msra.mxu0 %v80
  %117 = vmatmul.bf16.gmra.mxu0 %v86
  %v118 = vpop.f32.mrf.mxu0
  %v119 = vadd.f32 0.0, %v118
  %v120 = vpop.f32.mrf.mxu0
  %v121 = vadd.f32 0.0, %v120
  %122 = vmatmul.bf16.gmra.mxu0 %v89
  %v123 = vpop.f32.mrf.mxu0
  %v124 = vadd.f32 0.0, %v123
  %v125 = vpop.f32.mrf.mxu0
  %v126 = vadd.f32 0.0, %v125
  %127 = vmatmul.bf16.gmra.mxu0 %v92
  %v128 = vpop.f32.mrf.mxu0
  %v129 = vadd.f32 0.0, %v128
  %v130 = vpop.f32.mrf.mxu0
  %v131 = vadd.f32 0.0, %v130
  %132 = vmatmul.bf16.gmra.mxu0 %v95
  %v133 = vpop.f32.mrf.mxu0
  %v134 = vadd.f32 0.0, %v133
  %v135 = vpop.f32.mrf.mxu0
  %v136 = vadd.f32 0.0, %v135
  %137 = vmatmul.bf16.gmra.mxu0 %v98
  %v138 = vpop.f32.mrf.mxu0
  %v139 = vadd.f32 0.0, %v138
  %v140 = vpop.f32.mrf.mxu0
  %v141 = vadd.f32 0.0, %v140
  %142 = vmatmul.bf16.gmra.mxu0 %v101
  %v143 = vpop.f32.mrf.mxu0
  %v144 = vadd.f32 0.0, %v143
  %v145 = vpop.f32.mrf.mxu0
  %v146 = vadd.f32 0.0, %v145
  %147 = vmatmul.bf16.gmra.mxu0 %v104
  %v148 = vpop.f32.mrf.mxu0
  %v149 = vadd.f32 0.0, %v148
  %v150 = vpop.f32.mrf.mxu0
  %v151 = vadd.f32 0.0, %v150
  %152 = vmatmul.bf16.gmra.mxu0 %v107
  %v153 = vpop.f32.mrf.mxu0
  %v154 = vadd.f32 0.0, %v153
  %v155 = vpop.f32.mrf.mxu0
  %v156 = vadd.f32 0.0, %v155
  %157 = vdwg.mxu0
  %v158 = vpack.c.bf16 %v119, %v119
  %v159 = vpack.c.bf16 %v121, %v121
  %v160 = vpack.c.bf16 %v124, %v124
  %v161 = vpack.c.bf16 %v126, %v126
  %v162 = vpack.c.bf16 %v129, %v129
  %v163 = vpack.c.bf16 %v131, %v131
  %v164 = vpack.c.bf16 %v134, %v134
  %v165 = vpack.c.bf16 %v136, %v136
  %v166 = vpack.c.bf16 %v139, %v139
  %v167 = vpack.c.bf16 %v141, %v141
  %v168 = vpack.c.bf16 %v144, %v144
  %v169 = vpack.c.bf16 %v146, %v146
  %v170 = vpack.c.bf16 %v149, %v149
  %v171 = vpack.c.bf16 %v151, %v151
  %v172 = vpack.c.bf16 %v154, %v154
  %v173 = vpack.c.bf16 %v156, %v156
  %174 = vst [vmem:[%s2] sm:$0xf] %v158
  %175 = vst [vmem:[%s2 + $0x4] sm:$0xf] %v159
  %176 = vst [vmem:[%s2 + $0x8] sm:$0xf] %v160
  %177 = vst [vmem:[%s2 + $0xc] sm:$0xf] %v161
  %178 = vst [vmem:[%s2 + $0x10] sm:$0xf] %v162
  %179 = vst [vmem:[%s2 + $0x14] sm:$0xf] %v163
  %180 = vst [vmem:[%s2 + $0x18] sm:$0xf] %v164
  %181 = vst [vmem:[%s2 + $0x1c] sm:$0xf] %v165
  %182 = vst [vmem:[%s2 + $0x20] sm:$0xf] %v166
  %183 = vst [vmem:[%s2 + $0x24] sm:$0xf] %v167
  %184 = vst [vmem:[%s2 + $0x28] sm:$0xf] %v168
  %185 = vst [vmem:[%s2 + $0x2c] sm:$0xf] %v169
  %186 = vst [vmem:[%s2 + $0x30] sm:$0xf] %v170
  %187 = vst [vmem:[%s2 + $0x34] sm:$0xf] %v171
  %188 = vst [vmem:[%s2 + $0x38] sm:$0xf] %v172
  %189 = vst [vmem:[%s2 + $0x3c] sm:$0xf] %v173
  // Predicated region
  $region10: #{gnn_v1_forward.2} parent=0 // pred_check
    _
  $region11: #{gnn_v1_forward.2} parent=0 // pred_check_branch
    %191 = sbr.rel (0) target = $region13
  $region12: #{gnn_v1_forward.2} parent=0 // pred_region
    _
  $region13: #{gnn_v1_forward.2} parent=0 // pred_fallthru
    _
  // Predicated region
  $region14: #{gnn_v1_forward.2} parent=0 // pred_check
    _
  $region15: #{gnn_v1_forward.2} parent=0 // pred_check_branch
    %193 = sbr.rel (0) target = $region17
  $region16: #{gnn_v1_forward.2} parent=0 // pred_region
    _
  $region17: #{gnn_v1_forward.2} parent=0 // pred_fallthru
    _

// kernel: gnn_v1_forward.3
$region0: #{gnn_v1_forward.3}
  #allocation0 [shape = 'u32[]', space=smem, size = 0x4, offset = 0x4, fixed_abs, tag = 'smem constant byte address 0x4 - core index']
  #allocation1 [shape = 'u32[72,128]{1,0:T(1,128)}', space=vmem, size = 0x9000, scoped, tag = 'internal scratch']
  #allocation2 [shape = 'f32[128,128]{1,0:T(8,128)}', space=vmem, size = 0x10000, scoped, tag = 'scratch operand']
  %s0 = inlined_call_operand.vmem [shape: bf16[128,128], index: 0, kind: input, shape index: {}]
  %s1 = inlined_call_operand.vmem [shape: bf16[128,128], index: 1, kind: input, shape index: {}]
  %s2 = inlined_call_operand.vmem [shape: f32[1,128], index: 2, kind: input, shape index: {}]
  %s3 = inlined_call_operand.vmem [shape: f32[128,128], index: 3, kind: output, shape index: {}]
  %s4 = sld [smem:[#allocation0]]
  $region30: #{gnn_v1_forward.3} parent=0
    _
  %s6 = ssub.s32 1, %s4
  %s7 = scalar_select 0, %s6, %s4
  // Predicated region
  $region2: #{gnn_v1_forward.3} parent=0 // pred_check
    _
  $region3: #{gnn_v1_forward.3} parent=0 // pred_check_branch
    %9 = sbr.rel (0) target = $region5
  $region4: #{gnn_v1_forward.3} parent=0 // pred_region
    _
  $region5: #{gnn_v1_forward.3} parent=0 // pred_fallthru
    _
  // Predicated region
  $region6: #{gnn_v1_forward.3} parent=0 // pred_check
    _
  $region7: #{gnn_v1_forward.3} parent=0 // pred_check_branch
    %11 = sbr.rel (0) target = $region9
  $region8: #{gnn_v1_forward.3} parent=0 // pred_region
    _
  $region9: #{gnn_v1_forward.3} parent=0 // pred_fallthru
    _
  // Predicated region
  $region10: #{gnn_v1_forward.3} parent=0 // pred_check
    _
  $region11: #{gnn_v1_forward.3} parent=0 // pred_check_branch
    %13 = sbr.rel (0) target = $region13
  $region12: #{gnn_v1_forward.3} parent=0 // pred_region
    _
  $region13: #{gnn_v1_forward.3} parent=0 // pred_fallthru
    _
  %p14 = scmp.eq.s32.totalorder 0, 0
  // Predicated region
  $region14: #{gnn_v1_forward.3} parent=0 // pred_check
    %p15 = pneg %p14
  $region15: #{gnn_v1_forward.3} parent=0 // pred_check_branch
    %17 = sbr.rel (%p15) target = $region17
  $region16: #{gnn_v1_forward.3} parent=0 // pred_region
    %18 = vst [vmem:[#allocation2] sm:$0xff] 0.0
    %19 = vst [vmem:[#allocation2 + $0x8] sm:$0xff] 0.0
    %20 = vst [vmem:[#allocation2 + $0x10] sm:$0xff] 0.0
    %21 = vst [vmem:[#allocation2 + $0x18] sm:$0xff] 0.0
    %22 = vst [vmem:[#allocation2 + $0x20] sm:$0xff] 0.0
    %23 = vst [vmem:[#allocation2 + $0x28] sm:$0xff] 0.0
    %24 = vst [vmem:[#allocation2 + $0x30] sm:$0xff] 0.0
    %25 = vst [vmem:[#allocation2 + $0x38] sm:$0xff] 0.0
    %26 = vst [vmem:[#allocation2 + $0x40] sm:$0xff] 0.0
    %27 = vst [vmem:[#allocation2 + $0x48] sm:$0xff] 0.0
    %28 = vst [vmem:[#allocation2 + $0x50] sm:$0xff] 0.0
    %29 = vst [vmem:[#allocation2 + $0x58] sm:$0xff] 0.0
    %30 = vst [vmem:[#allocation2 + $0x60] sm:$0xff] 0.0
    %31 = vst [vmem:[#allocation2 + $0x68] sm:$0xff] 0.0
    %32 = vst [vmem:[#allocation2 + $0x70] sm:$0xff] 0.0
    %33 = vst [vmem:[#allocation2 + $0x78] sm:$0xff] 0.0
  $region17: #{gnn_v1_forward.3} parent=0 // pred_fallthru
    _
  %v34 = vld [vmem:[#allocation2] sm:$0xff]
  %v35 = vld [vmem:[#allocation2 + $0x8] sm:$0xff]
  %v36 = vld [vmem:[#allocation2 + $0x10] sm:$0xff]
  %v37 = vld [vmem:[#allocation2 + $0x18] sm:$0xff]
  %v38 = vld [vmem:[#allocation2 + $0x20] sm:$0xff]
  %v39 = vld [vmem:[#allocation2 + $0x28] sm:$0xff]
  %v40 = vld [vmem:[#allocation2 + $0x30] sm:$0xff]
  %v41 = vld [vmem:[#allocation2 + $0x38] sm:$0xff]
  %v42 = vld [vmem:[#allocation2 + $0x40] sm:$0xff]
  %v43 = vld [vmem:[#allocation2 + $0x48] sm:$0xff]
  %v44 = vld [vmem:[#allocation2 + $0x50] sm:$0xff]
  %v45 = vld [vmem:[#allocation2 + $0x58] sm:$0xff]
  %v46 = vld [vmem:[#allocation2 + $0x60] sm:$0xff]
  %v47 = vld [vmem:[#allocation2 + $0x68] sm:$0xff]
  %v48 = vld [vmem:[#allocation2 + $0x70] sm:$0xff]
  %v49 = vld [vmem:[#allocation2 + $0x78] sm:$0xff]
  %v50 = vld [vmem:[%s0] sm:$0xf]
  %v51 = vld [vmem:[%s0 + $0x4] sm:$0xf]
  %v52 = vld [vmem:[%s0 + $0x8] sm:$0xf]
  %v53 = vld [vmem:[%s0 + $0xc] sm:$0xf]
  %v54 = vld [vmem:[%s0 + $0x10] sm:$0xf]
  %v55 = vld [vmem:[%s0 + $0x14] sm:$0xf]
  %v56 = vld [vmem:[%s0 + $0x18] sm:$0xf]
  %v57 = vld [vmem:[%s0 + $0x1c] sm:$0xf]
  %v58 = vld [vmem:[%s0 + $0x20] sm:$0xf]
  %v59 = vld [vmem:[%s0 + $0x24] sm:$0xf]
  %v60 = vld [vmem:[%s0 + $0x28] sm:$0xf]
  %v61 = vld [vmem:[%s0 + $0x2c] sm:$0xf]
  %v62 = vld [vmem:[%s0 + $0x30] sm:$0xf]
  %v63 = vld [vmem:[%s0 + $0x34] sm:$0xf]
  %v64 = vld [vmem:[%s0 + $0x38] sm:$0xf]
  %v65 = vld [vmem:[%s0 + $0x3c] sm:$0xf]
  %v66 = vld [vmem:[%s1] sm:$0xf]
  %v67 = vld [vmem:[%s1 + $0x4] sm:$0xf]
  %v68 = vld [vmem:[%s1 + $0x8] sm:$0xf]
  %v69 = vld [vmem:[%s1 + $0xc] sm:$0xf]
  %v70 = vld [vmem:[%s1 + $0x10] sm:$0xf]
  %v71 = vld [vmem:[%s1 + $0x14] sm:$0xf]
  %v72 = vld [vmem:[%s1 + $0x18] sm:$0xf]
  %v73 = vld [vmem:[%s1 + $0x1c] sm:$0xf]
  %v74 = vld [vmem:[%s1 + $0x20] sm:$0xf]
  %v75 = vld [vmem:[%s1 + $0x24] sm:$0xf]
  %v76 = vld [vmem:[%s1 + $0x28] sm:$0xf]
  %v77 = vld [vmem:[%s1 + $0x2c] sm:$0xf]
  %v78 = vld [vmem:[%s1 + $0x30] sm:$0xf]
  %v79 = vld [vmem:[%s1 + $0x34] sm:$0xf]
  %v80 = vld [vmem:[%s1 + $0x38] sm:$0xf]
  %v81 = vld [vmem:[%s1 + $0x3c] sm:$0xf]
  %v98 = vunpack.c.l.b16 %v50
  %v99 = vunpack.c.l.b16 %v51
  %v100 = vunpack.c.l.b16 %v52
  %v101 = vunpack.c.l.b16 %v53
  %v102 = vunpack.c.l.b16 %v54
  %v103 = vunpack.c.l.b16 %v55
  %v104 = vunpack.c.l.b16 %v56
  %v105 = vunpack.c.l.b16 %v57
  %v106 = vunpack.c.l.b16 %v58
  %v107 = vunpack.c.l.b16 %v59
  %v108 = vunpack.c.l.b16 %v60
  %v109 = vunpack.c.l.b16 %v61
  %v110 = vunpack.c.l.b16 %v62
  %v111 = vunpack.c.l.b16 %v63
  %v112 = vunpack.c.l.b16 %v64
  %v113 = vunpack.c.l.b16 %v65
  %v114 = vpack.c.b16 %v99, %v98
  %v115 = vpack.c.b16 %v101, %v100
  %v116 = vpack.c.b16 %v103, %v102
  %v117 = vpack.c.b16 %v105, %v104
  %v118 = vpack.c.b16 %v107, %v106
  %v119 = vpack.c.b16 %v109, %v108
  %v120 = vpack.c.b16 %v111, %v110
  %v121 = vpack.c.b16 %v113, %v112
  %v146 = vunpack.c.l.b16 %v66
  %v147 = vunpack.c.l.b16 %v67
  %v148 = vunpack.c.l.b16 %v68
  %v149 = vunpack.c.l.b16 %v69
  %v150 = vunpack.c.l.b16 %v70
  %v151 = vunpack.c.l.b16 %v71
  %v152 = vunpack.c.l.b16 %v72
  %v153 = vunpack.c.l.b16 %v73
  %v154 = vunpack.c.l.b16 %v74
  %v155 = vunpack.c.l.b16 %v75
  %v156 = vunpack.c.l.b16 %v76
  %v157 = vunpack.c.l.b16 %v77
  %v158 = vunpack.c.l.b16 %v78
  %v159 = vunpack.c.l.b16 %v79
  %v160 = vunpack.c.l.b16 %v80
  %v161 = vunpack.c.l.b16 %v81
  %v162 = vpack.c.b16 %v147, %v146
  %v163 = vpack.c.b16 %v149, %v148
  %v164 = vpack.c.b16 %v151, %v150
  %v165 = vpack.c.b16 %v153, %v152
  %v166 = vpack.c.b16 %v155, %v154
  %v167 = vpack.c.b16 %v157, %v156
  %v168 = vpack.c.b16 %v159, %v158
  %v169 = vpack.c.b16 %v161, %v160
  %178 = vmatpush.bf16.msra.mxu0 %v169
  %179 = vmatpush.bf16.msra.mxu0 %v168
  %180 = vmatpush.bf16.msra.mxu0 %v167
  %181 = vmatpush.bf16.msra.mxu0 %v166
  %182 = vmatpush.bf16.msra.mxu0 %v165
  %183 = vmatpush.bf16.msra.mxu0 %v164
  %184 = vmatpush.bf16.msra.mxu0 %v163
  %185 = vmatpush.bf16.msra.mxu0 %v162
  %186 = vmatmul.bf16.gmra.mxu0 %v114
  %v187 = vpop.f32.mrf.mxu0
  %v188 = vadd.f32 0.0, %v187
  %v189 = vpop.f32.mrf.mxu0
  %v190 = vadd.f32 0.0, %v189
  %191 = vmatmul.bf16.gmra.mxu0 %v115
  %v192 = vpop.f32.mrf.mxu0
  %v193 = vadd.f32 0.0, %v192
  %v194 = vpop.f32.mrf.mxu0
  %v195 = vadd.f32 0.0, %v194
  %196 = vmatmul.bf16.gmra.mxu0 %v116
  %v197 = vpop.f32.mrf.mxu0
  %v198 = vadd.f32 0.0, %v197
  %v199 = vpop.f32.mrf.mxu0
  %v200 = vadd.f32 0.0, %v199
  %201 = vmatmul.bf16.gmra.mxu0 %v117
  %v202 = vpop.f32.mrf.mxu0
  %v203 = vadd.f32 0.0, %v202
  %v204 = vpop.f32.mrf.mxu0
  %v205 = vadd.f32 0.0, %v204
  %206 = vmatmul.bf16.gmra.mxu0 %v118
  %v207 = vpop.f32.mrf.mxu0
  %v208 = vadd.f32 0.0, %v207
  %v209 = vpop.f32.mrf.mxu0
  %v210 = vadd.f32 0.0, %v209
  %211 = vmatmul.bf16.gmra.mxu0 %v119
  %v212 = vpop.f32.mrf.mxu0
  %v213 = vadd.f32 0.0, %v212
  %v214 = vpop.f32.mrf.mxu0
  %v215 = vadd.f32 0.0, %v214
  %216 = vmatmul.bf16.gmra.mxu0 %v120
  %v217 = vpop.f32.mrf.mxu0
  %v218 = vadd.f32 0.0, %v217
  %v219 = vpop.f32.mrf.mxu0
  %v220 = vadd.f32 0.0, %v219
  %221 = vmatmul.bf16.gmra.mxu0 %v121
  %v222 = vpop.f32.mrf.mxu0
  %v223 = vadd.f32 0.0, %v222
  %v224 = vpop.f32.mrf.mxu0
  %v225 = vadd.f32 0.0, %v224
  %226 = vdwg.mxu0
  %v227 = vadd.f32 %v34, %v188
  %v228 = vadd.f32 %v35, %v190
  %v229 = vadd.f32 %v36, %v193
  %v230 = vadd.f32 %v37, %v195
  %v231 = vadd.f32 %v38, %v198
  %v232 = vadd.f32 %v39, %v200
  %v233 = vadd.f32 %v40, %v203
  %v234 = vadd.f32 %v41, %v205
  %v235 = vadd.f32 %v42, %v208
  %v236 = vadd.f32 %v43, %v210
  %v237 = vadd.f32 %v44, %v213
  %v238 = vadd.f32 %v45, %v215
  %v239 = vadd.f32 %v46, %v218
  %v240 = vadd.f32 %v47, %v220
  %v241 = vadd.f32 %v48, %v223
  %v242 = vadd.f32 %v49, %v225
  %243 = vst [vmem:[#allocation2] sm:$0xff] %v227
  %244 = vst [vmem:[#allocation2 + $0x8] sm:$0xff] %v228
  %245 = vst [vmem:[#allocation2 + $0x10] sm:$0xff] %v229
  %246 = vst [vmem:[#allocation2 + $0x18] sm:$0xff] %v230
  %247 = vst [vmem:[#allocation2 + $0x20] sm:$0xff] %v231
  %248 = vst [vmem:[#allocation2 + $0x28] sm:$0xff] %v232
  %249 = vst [vmem:[#allocation2 + $0x30] sm:$0xff] %v233
  %250 = vst [vmem:[#allocation2 + $0x38] sm:$0xff] %v234
  %251 = vst [vmem:[#allocation2 + $0x40] sm:$0xff] %v235
  %252 = vst [vmem:[#allocation2 + $0x48] sm:$0xff] %v236
  %253 = vst [vmem:[#allocation2 + $0x50] sm:$0xff] %v237
  %254 = vst [vmem:[#allocation2 + $0x58] sm:$0xff] %v238
  %255 = vst [vmem:[#allocation2 + $0x60] sm:$0xff] %v239
  %256 = vst [vmem:[#allocation2 + $0x68] sm:$0xff] %v240
  %257 = vst [vmem:[#allocation2 + $0x70] sm:$0xff] %v241
  %258 = vst [vmem:[#allocation2 + $0x78] sm:$0xff] %v242
  // Predicated region
  $region18: #{gnn_v1_forward.3} parent=0 // pred_check
    %p259 = pneg %p14
  $region19: #{gnn_v1_forward.3} parent=0 // pred_check_branch
    %261 = sbr.rel (%p259) target = $region21
  $region20: #{gnn_v1_forward.3} parent=0 // pred_region
    %v262 = vld [vmem:[#allocation2] sm:$0xff]
    %v263 = vld [vmem:[#allocation2 + $0x8] sm:$0xff]
    %v264 = vld [vmem:[#allocation2 + $0x10] sm:$0xff]
    %v265 = vld [vmem:[#allocation2 + $0x18] sm:$0xff]
    %v266 = vld [vmem:[#allocation2 + $0x20] sm:$0xff]
    %v267 = vld [vmem:[#allocation2 + $0x28] sm:$0xff]
    %v268 = vld [vmem:[#allocation2 + $0x30] sm:$0xff]
    %v269 = vld [vmem:[#allocation2 + $0x38] sm:$0xff]
    %v270 = vld [vmem:[#allocation2 + $0x40] sm:$0xff]
    %v271 = vld [vmem:[#allocation2 + $0x48] sm:$0xff]
    %v272 = vld [vmem:[#allocation2 + $0x50] sm:$0xff]
    %v273 = vld [vmem:[#allocation2 + $0x58] sm:$0xff]
    %v274 = vld [vmem:[#allocation2 + $0x60] sm:$0xff]
    %v275 = vld [vmem:[#allocation2 + $0x68] sm:$0xff]
    %v276 = vld [vmem:[#allocation2 + $0x70] sm:$0xff]
    %v277 = vld [vmem:[#allocation2 + $0x78] sm:$0xff]
    %v278 = vld [vmem:[%s2] sm:$0x1]
    %v280 = vperm.slane %v278, 0
    %v282 = vadd.f32 %v262, %v280
    %v283 = vadd.f32 %v263, %v280
    %v284 = vadd.f32 %v264, %v280
    %v285 = vadd.f32 %v265, %v280
    %v286 = vadd.f32 %v266, %v280
    %v287 = vadd.f32 %v267, %v280
    %v288 = vadd.f32 %v268, %v280
    %v289 = vadd.f32 %v269, %v280
    %v290 = vadd.f32 %v270, %v280
    %v291 = vadd.f32 %v271, %v280
    %v292 = vadd.f32 %v272, %v280
    %v293 = vadd.f32 %v273, %v280
    %v294 = vadd.f32 %v274, %v280
    %v295 = vadd.f32 %v275, %v280
    %v296 = vadd.f32 %v276, %v280
    %v297 = vadd.f32 %v277, %v280
    %298 = vst [vmem:[%s3] sm:$0xff] %v282
    %299 = vst [vmem:[%s3 + $0x8] sm:$0xff] %v283
    %300 = vst [vmem:[%s3 + $0x10] sm:$0xff] %v284
    %301 = vst [vmem:[%s3 + $0x18] sm:$0xff] %v285
    %302 = vst [vmem:[%s3 + $0x20] sm:$0xff] %v286
    %303 = vst [vmem:[%s3 + $0x28] sm:$0xff] %v287
    %304 = vst [vmem:[%s3 + $0x30] sm:$0xff] %v288
    %305 = vst [vmem:[%s3 + $0x38] sm:$0xff] %v289
    %306 = vst [vmem:[%s3 + $0x40] sm:$0xff] %v290
    %307 = vst [vmem:[%s3 + $0x48] sm:$0xff] %v291
    %308 = vst [vmem:[%s3 + $0x50] sm:$0xff] %v292
    %309 = vst [vmem:[%s3 + $0x58] sm:$0xff] %v293
    %310 = vst [vmem:[%s3 + $0x60] sm:$0xff] %v294
    %311 = vst [vmem:[%s3 + $0x68] sm:$0xff] %v295
    %312 = vst [vmem:[%s3 + $0x70] sm:$0xff] %v296
    %313 = vst [vmem:[%s3 + $0x78] sm:$0xff] %v297
  $region21: #{gnn_v1_forward.3} parent=0 // pred_fallthru
    _
  // Predicated region
  $region22: #{gnn_v1_forward.3} parent=0 // pred_check
    _
  $region23: #{gnn_v1_forward.3} parent=0 // pred_check_branch
    %315 = sbr.rel (0) target = $region25
  $region24: #{gnn_v1_forward.3} parent=0 // pred_region
    _
  $region25: #{gnn_v1_forward.3} parent=0 // pred_fallthru
    _
  // Predicated region
  $region26: #{gnn_v1_forward.3} parent=0 // pred_check
    _
  $region27: #{gnn_v1_forward.3} parent=0 // pred_check_branch
    %317 = sbr.rel (0) target = $region29
  $region28: #{gnn_v1_forward.3} parent=0 // pred_region
    _
  $region29: #{gnn_v1_forward.3} parent=0 // pred_fallthru
    _

</llo_original>
